<compile_context>
chip_gen: v6e
topology: v6e:2x2x1
jax: 0.10.0
libtpu: 0.0.40
codegen_flags: <defaults>
</compile_context>

<pallas_src>
import jax
import jax.numpy as jnp
from jax.experimental import pallas as pl
from jax.experimental.pallas import tpu as pltpu

EPS = 1e-4  # matches l2normalize eps=0.0001


def _round_up(a, b):
    return ((a + b - 1) // b) * b


def _cdiv(a, b):
    return (a + b - 1) // b


def _largest_divisor(n, target, align):
    """Largest d <= target with d % align == 0 and n % d == 0, else None."""
    d = min(target, n)
    d -= d % align
    while d >= align:
        if n % d == 0:
            return d
        d -= align
    return None


def _vmem_budget_bytes():
    """(vmem_limit_bytes, has_big_vmem) derived from the local TPU generation."""
    try:
        cap = int(pltpu.get_tpu_info().vmem_capacity_bytes)
    except Exception:
        return 36 * 1024 * 1024, False          # conservative default
    if cap <= 64 * 1024 * 1024:                 # v7x: 64 MiB physical per TC
        return 36 * 1024 * 1024, False
    return 64 * 1024 * 1024, True               # v5e/v6e: 128 MiB physical


# --------------------------------------------------------------------------
# Kernel 1: one power iteration, tiled over Kd.
#   Wt layout: (Kd, Cout)  (Kd order = (ki, kj, ci); permutation-invariant math)
#   phase 0: ss += || (Wt_k u)_k ||^2          (per Kd tile)
#   phase 1: v_k = (Wt_k u) / (sqrt(ss)+eps);  wv += Wt_k^T v_k  -> (1, Cout)
#   finalize: u_new = wv/(||wv||+eps);  inv_sigma = 1/(u_new . wv)
# --------------------------------------------------------------------------
def _sn_power_iter_kernel(wt_ref, u_ref, inv_sigma_ref, unew_ref, ss_ref, wv_ref):
    phase = pl.program_id(0)
    k = pl.program_id(1)
    nk = pl.num_programs(1)

    wt = wt_ref[...]                                        # (bks, Coutp) f32
    u_row = u_ref[...]                                      # (1, Coutp)   f32
    wtu = jnp.sum(wt * u_row, axis=1, keepdims=True)        # (bks, 1) lane reduce

    @pl.when((phase == 0) & (k == 0))
    def _():
        ss_ref[...] = jnp.zeros_like(ss_ref)

    @pl.when(phase == 0)
    def _():
        ss_ref[...] += jnp.sum(wtu * wtu).reshape(1, 1)

    @pl.when((phase == 1) & (k == 0))
    def _():
        wv_ref[...] = jnp.zeros_like(wv_ref)

    @pl.when(phase == 1)
    def _():
        inv_norm = 1.0 / (jnp.sqrt(ss_ref[...]) + EPS)      # (1,1)
        v_k = wtu * inv_norm                                # (bks, 1)
        wv_ref[...] += jnp.sum(wt * v_k, axis=0, keepdims=True)   # (1, Coutp)

    @pl.when((phase == 1) & (k == nk - 1))
    def _():
        wv = wv_ref[...]                                    # (1, Coutp)
        nrm2 = jnp.sum(wv * wv).reshape(1, 1)
        nrm = jnp.sqrt(nrm2)
        u_new = wv / (nrm + EPS)                            # lane-dense row store
        sigma = nrm2 / (nrm + EPS)                          # = u_new . wv
        unew_ref[...] = u_new
        inv_sigma_ref[...] = 1.0 / sigma


# --------------------------------------------------------------------------
# Kernel 2: conv-as-matmul tile with K accumulation; bias + 1/sigma folded in.
# --------------------------------------------------------------------------
def _convmm_kernel(inv_sigma_ref, p_ref, w_ref, b_ref, o_ref, acc_ref):
    """p_ref: (bm, bk) bf16, w_ref: (bk, bn) bf16, b_ref: (1, bn) f32,
    inv_sigma_ref: (1,1) f32 in SMEM, acc_ref: (bm, bn) f32 scratch."""
    k = pl.program_id(2)

    @pl.when(k == 0)
    def _():
        acc_ref[...] = jnp.zeros_like(acc_ref)

    acc_ref[...] += jnp.dot(p_ref[...], w_ref[...],
                            preferred_element_type=jnp.float32)

    @pl.when(k == pl.num_programs(2) - 1)
    def _():
        o_ref[...] = (acc_ref[...] * inv_sigma_ref[0, 0]
                      + b_ref[...].astype(jnp.float32)).astype(o_ref.dtype)


# --------------------------------------------------------------------------
# Wrapper: SpectralNorm(Conv2d(Cin, Cout, k, stride=1, padding)).forward
# --------------------------------------------------------------------------
def spectral_norm_conv2d(x, weight, bias, u, *, padding=1,
                         bm=1024, bn=None, bk=None, out_dtype=None):
    """x: (N, Cin, H, W) NCHW; weight: (Cout, Cin, kH, kW) OIHW; bias: (Cout,);
    u: (Cout,) persistent spectral-norm vector.
    Returns (y_nchw, u_new) — caller must persist u_new (PyTorch parity)."""
    Cout, Cin, kH, kW = weight.shape
    N, _, H, W = x.shape
    Kd = Cin * kH * kW
    Ho = H + 2 * padding - kH + 1
    Wo = W + 2 * padding - kW + 1
    M = N * Ho * Wo
    out_dtype = x.dtype if out_dtype is None else out_dtype

    vmem_limit, big_vmem = _vmem_budget_bytes()

    # Weight in (Kd, Cout) layout; Kd ordering (ki, kj, ci) matches patches below.
    wt = jnp.transpose(weight, (2, 3, 1, 0)).reshape(Kd, Cout)

    # Lane-dense / MXU-aligned output-channel padding (128 min, 256 preferred).
    cout_align = 128 if Cout <= 128 else 256
    Cout_pad = _round_up(Cout, cout_align)

    # ---- Kernel 1: sigma + updated u, streamed over Kd tiles (f32 parity) ----
    bks = 256 if Kd > 256 else _round_up(Kd, 8)
    Kd_pad_s = _round_up(Kd, bks)
    wt_f32 = jnp.zeros((Kd_pad_s, Cout_pad), jnp.float32).at[:Kd, :Cout].set(
        wt.astype(jnp.float32))
    u_row = jnp.zeros((1, Cout_pad), jnp.float32).at[0, :Cout].set(
        u.astype(jnp.float32))
    nks = Kd_pad_s // bks

    inv_sigma, u_new = pl.pallas_call(
        _sn_power_iter_kernel,
        out_shape=(jax.ShapeDtypeStruct((1, 1), jnp.float32),
                   jax.ShapeDtypeStruct((1, Cout_pad), jnp.float32)),
        grid=(2, nks),
        in_specs=[
            pl.BlockSpec((bks, Cout_pad), lambda p, k: (k, 0)),
            pl.BlockSpec((1, Cout_pad), lambda p, k: (0, 0),
                         pipeline_mode=pl.Buffered(buffer_count=1)),
        ],
        out_specs=[
            pl.BlockSpec((1, 1), lambda p, k: (0, 0)),
            pl.BlockSpec((1, Cout_pad), lambda p, k: (0, 0)),
        ],
        scratch_shapes=[pltpu.VMEM((1, 1), jnp.float32),
                        pltpu.VMEM((1, Cout_pad), jnp.float32)],
        compiler_params=pltpu.CompilerParams(
            dimension_semantics=("arbitrary", "arbitrary"),
            vmem_limit_bytes=vmem_limit),
    )(wt_f32, u_row)

    # ---- im2col glue: NHWC view so Kd is already lane-major, bf16 stream ----
    # TODO(synk): fuse im2col into the conv kernel (manual-DMA halo reads over
    #             the padded NHWC input) to drop this 9x-expanded intermediate.
    x_nhwc = jnp.transpose(x, (0, 2, 3, 1)).astype(jnp.bfloat16)
    x_padded = jnp.pad(x_nhwc,
                       ((0, 0), (padding, padding), (padding, padding), (0, 0)))
    taps = [x_padded[:, ki:ki + Ho, kj:kj + Wo, :]
            for ki in range(kH) for kj in range(kW)]
    patches = jnp.concatenate(taps, axis=-1).reshape(M, Kd)   # Kd = (ki, kj, ci)

    # ---- Tile selection: grow bm/bn first, keep bk modest (VMEM only) -------
    if bn is None:
        bn = Cout_pad if Cout_pad <= 1024 else _largest_divisor(Cout_pad, 512, 256)
    if Cout_pad % bn:
        bn = Cout_pad
    if bk is None:
        if Kd <= 512:
            bk = Kd
        else:
            bk = _largest_divisor(Kd, 512, 128) or 512
    Kd_pad_c = _round_up(Kd, bk)

    bm_eff = _largest_divisor(M, bm, 8) or min(bm, _round_up(M, 8))
    # v7x megacore balance: keep the parallel grid product >= 2 when possible.
    while (_cdiv(M, bm_eff) * (Cout_pad // bn) < 2
           and bm_eff % 16 == 0 and bm_eff > 8):
        bm_eff //= 2
    M_pad = _round_up(M, bm_eff)

    if M_pad != M or Kd_pad_c != Kd:
        # Rare fallback (bm chosen as a divisor of M and bk of Kd when possible).
        # TODO(synk): costs one extra HBM pass over the expanded patches tensor.
        patches = jnp.pad(patches, ((0, M_pad - M), (0, Kd_pad_c - Kd)))

    w_conv = jnp.zeros((Kd_pad_c, Cout_pad), jnp.bfloat16).at[:Kd, :Cout].set(
        wt.astype(jnp.bfloat16))
    bias2d = jnp.zeros((1, Cout_pad), jnp.float32).at[0, :Cout].set(
        bias.astype(jnp.float32))

    grid = (M_pad // bm_eff, Cout_pad // bn, Kd_pad_c // bk)
    n_steps = grid[0] * grid[1] * grid[2]
    w_invariant = (grid[1] == 1 and grid[2] == 1)
    b_invariant = (grid[1] == 1)
    # Deeper patches pipeline only on 128-MiB-VMEM generations (v5e/v6e).
    patches_mode = pl.Buffered(buffer_count=3) if (big_vmem and n_steps >= 3) else None

    out_flat = pl.pallas_call(
        _convmm_kernel,
        out_shape=jax.ShapeDtypeStruct((M_pad, Cout_pad), out_dtype),
        grid=grid,
        in_specs=[
            pl.BlockSpec(memory_space=pltpu.MemorySpace.SMEM),      # inv_sigma (1,1)
            pl.BlockSpec((bm_eff, bk), lambda i, j, k: (i, k),
                         pipeline_mode=patches_mode),
            pl.BlockSpec((bk, bn), lambda i, j, k: (k, j),
                         pipeline_mode=pl.Buffered(buffer_count=1) if w_invariant else None),
            pl.BlockSpec((1, bn), lambda i, j, k: (0, j),
                         pipeline_mode=pl.Buffered(buffer_count=1) if b_invariant else None),
        ],
        out_specs=pl.BlockSpec((bm_eff, bn), lambda i, j, k: (i, j)),
        scratch_shapes=[pltpu.VMEM((bm_eff, bn), jnp.float32)],
        compiler_params=pltpu.CompilerParams(
            dimension_semantics=("parallel", "parallel", "arbitrary"),
            vmem_limit_bytes=vmem_limit),
    )(inv_sigma, patches, w_conv, bias2d)

    out = out_flat[:M, :Cout].reshape(N, Ho, Wo, Cout)
    # NOTE: NHWC->NCHW is an extra HBM pass kept only for PyTorch-module parity;
    # keep the model NHWC (and bf16) downstream to delete it.
    out = jnp.transpose(out, (0, 3, 1, 2))
    return out, u_new[0, :Cout]


# --------------------------------------------------------------------------
# Plain-JAX reference replicating the PyTorch semantics exactly (f32).
# --------------------------------------------------------------------------
def _reference(x, weight, bias, u):
    w_mat = weight.reshape(weight.shape[0], -1)
    v = w_mat.T @ u
    v = v / (jnp.linalg.norm(v) + EPS)
    u2 = w_mat @ v
    u2 = u2 / (jnp.linalg.norm(u2) + EPS)
    sigma = u2 @ (w_mat @ v)
    w_sn = weight / sigma
    out = jax.lax.conv_general_dilated(
        x, w_sn, window_strides=(1, 1), padding=((1, 1), (1, 1)),
        dimension_numbers=("NCHW", "OIHW", "NCHW"),
    )
    return out + bias.reshape(1, -1, 1, 1), u2


if __name__ == "__main__":
    key = jax.random.PRNGKey(0)
    kx, kw, kb, ku = jax.random.split(key, 4)

    N, Cin, H, W = 2, 4, 16, 16
    Cout, kH, kW_ = 8, 3, 3

    x = jax.random.normal(kx, (N, Cin, H, W), dtype=jnp.float32)
    weight = jax.random.normal(kw, (Cout, Cin, kH, kW_), dtype=jnp.float32) * 0.1
    bias = jax.random.normal(kb, (Cout,), dtype=jnp.float32) * 0.1
    u_raw = jax.random.normal(ku, (Cout,), dtype=jnp.float32)
    u = u_raw / (jnp.linalg.norm(u_raw) + EPS)

    # bm=256 at these toy shapes so the tiled M grid is actually exercised
    # (default bm=1024 is the intended production row tile).
    out, u_new = spectral_norm_conv2d(x, weight, bias, u, bm=256)
    out = jax.block_until_ready(out)
    u_new = jax.block_until_ready(u_new)

    ref_out, ref_u = _reference(x, weight, bias, u)
    assert out.shape == (N, Cout, H, W)
    # conv matmul runs with bf16 MXU operands (f32 accumulation) -> loosened tol
    assert jnp.allclose(out, ref_out, atol=3e-2, rtol=3e-2), \
        float(jnp.max(jnp.abs(out - ref_out)))
    # power-iteration / sigma math stays in f32 -> tight tol
    assert jnp.allclose(u_new, ref_u, atol=1e-5, rtol=1e-5)

    print("KERNEL_OK")
</pallas_src>

<mosaic_0001>
module attributes {stable_mosaic.version = 11 : i64} {
  func.func @_sn_power_iter_kernel(%arg0: i32, %arg1: i32, %arg2: memref<40x128xf32, #tpu.memory_space<vmem>>, %arg3: memref<1x128xf32, #tpu.memory_space<vmem>>, %arg4: memref<1x1xf32, #tpu.memory_space<vmem>>, %arg5: memref<1x128xf32, #tpu.memory_space<vmem>>, %arg6: memref<1x1xf32, #tpu.memory_space<vmem>>, %arg7: memref<1x128xf32, #tpu.memory_space<vmem>>) attributes {dimension_semantics = [#tpu.dimension_semantics<arbitrary>, #tpu.dimension_semantics<arbitrary>], iteration_bounds = array<i64: 2, 1>, scalar_prefetch = 0 : i64, scratch_operands = 2 : i64, tpu.core_type = #tpu.core_type<tc>, window_params = [{transform_indices = @transform_0, window_bounds = array<i64: 40, 128>}, {pipeline_mode = #tpu.pipeline_mode<synchronous>, transform_indices = @transform_1, window_bounds = array<i64: 1, 128>}, {pipeline_mode = #tpu.pipeline_mode<synchronous>, transform_indices = @transform_2, window_bounds = array<i64: 1, 1>}, {pipeline_mode = #tpu.pipeline_mode<synchronous>, transform_indices = @transform_3, window_bounds = array<i64: 1, 128>}]} {
    %c0 = arith.constant 0 : index
    %c0_0 = arith.constant 0 : index
    %0 = vector.load %arg2[%c0, %c0_0] : memref<40x128xf32, #tpu.memory_space<vmem>>, vector<40x128xf32>
    %c0_1 = arith.constant 0 : index
    %c0_2 = arith.constant 0 : index
    %1 = vector.load %arg3[%c0_1, %c0_2] : memref<1x128xf32, #tpu.memory_space<vmem>>, vector<1x128xf32>
    %2 = vector.broadcast %1 : vector<1x128xf32> to vector<40x128xf32>
    %3 = arith.mulf %0, %2 : vector<40x128xf32>
    %cst = arith.constant dense<0.000000e+00> : vector<40xf32>
    %4 = vector.multi_reduction <add>, %3, %cst [1] : vector<40x128xf32> to vector<40xf32>
    %5 = vector.shape_cast %4 : vector<40xf32> to vector<40x1xf32>
    %c0_i32 = arith.constant 0 : i32
    %6 = arith.cmpi eq, %arg0, %c0_i32 : i32
    %c0_i32_3 = arith.constant 0 : i32
    %7 = arith.cmpi eq, %arg1, %c0_i32_3 : i32
    %8 = arith.andi %6, %7 : i1
    %9 = arith.extui %8 : i1 to i32
    %c0_i32_4 = arith.constant 0 : i32
    %10 = arith.cmpi ne, %9, %c0_i32_4 : i32
    scf.if %10 {
      %cst_14 = arith.constant 0.000000e+00 : f32
      %27 = vector.broadcast %cst_14 : f32 to vector<1x1xf32>
      %c0_15 = arith.constant 0 : index
      %c0_16 = arith.constant 0 : index
      %28 = vector.load %arg6[%c0_15, %c0_16] : memref<1x1xf32, #tpu.memory_space<vmem>>, vector<1x1xf32>
      tpu.vector_store %arg6[%c0_15, %c0_16], %27 {strides = array<i32>} : memref<1x1xf32, #tpu.memory_space<vmem>>, vector<1x1xf32>,
    } else {
    }
    %c0_i32_5 = arith.constant 0 : i32
    %11 = arith.cmpi eq, %arg0, %c0_i32_5 : i32
    %12 = arith.extui %11 : i1 to i32
    %c0_i32_6 = arith.constant 0 : i32
    %13 = arith.cmpi ne, %12, %c0_i32_6 : i32
    scf.if %13 {
      %c0_14 = arith.constant 0 : index
      %c0_15 = arith.constant 0 : index
      %27 = vector.load %arg6[%c0_14, %c0_15] : memref<1x1xf32, #tpu.memory_space<vmem>>, vector<1x1xf32>
      %28 = arith.mulf %5, %5 : vector<40x1xf32>
      %29 = vector.shape_cast %28 : vector<40x1xf32> to vector<1x40x1xf32>
      %cst_16 = arith.constant dense<0.000000e+00> : vector<1xf32>
      %30 = vector.multi_reduction <add>, %29, %cst_16 [1, 2] : vector<1x40x1xf32> to vector<1xf32>
      %31 = vector.shape_cast %30 : vector<1xf32> to vector<1x1x1xf32>
      %32 = vector.extract %31[0, 0, 0] : f32 from vector<1x1x1xf32>
      %33 = vector.broadcast %32 : f32 to vector<1x1xf32>
      %34 = arith.addf %27, %33 : vector<1x1xf32>
      %c0_17 = arith.constant 0 : index
      %c0_18 = arith.constant 0 : index
      %35 = vector.load %arg6[%c0_17, %c0_18] : memref<1x1xf32, #tpu.memory_space<vmem>>, vector<1x1xf32>
      tpu.vector_store %arg6[%c0_17, %c0_18], %34 {strides = array<i32>} : memref<1x1xf32, #tpu.memory_space<vmem>>, vector<1x1xf32>,
    } else {
    }
    %c1_i32 = arith.constant 1 : i32
    %14 = arith.cmpi eq, %arg0, %c1_i32 : i32
    %c0_i32_7 = arith.constant 0 : i32
    %15 = arith.cmpi eq, %arg1, %c0_i32_7 : i32
    %16 = arith.andi %14, %15 : i1
    %17 = arith.extui %16 : i1 to i32
    %c0_i32_8 = arith.constant 0 : i32
    %18 = arith.cmpi ne, %17, %c0_i32_8 : i32
    scf.if %18 {
      %cst_14 = arith.constant 0.000000e+00 : f32
      %27 = vector.broadcast %cst_14 : f32 to vector<1x128xf32>
      %c0_15 = arith.constant 0 : index
      %c0_16 = arith.constant 0 : index
      %28 = vector.load %arg7[%c0_15, %c0_16] : memref<1x128xf32, #tpu.memory_space<vmem>>, vector<1x128xf32>
      tpu.vector_store %arg7[%c0_15, %c0_16], %27 {strides = array<i32>} : memref<1x128xf32, #tpu.memory_space<vmem>>, vector<1x128xf32>,
    } else {
    }
    %c1_i32_9 = arith.constant 1 : i32
    %19 = arith.cmpi eq, %arg0, %c1_i32_9 : i32
    %20 = arith.extui %19 : i1 to i32
    %c0_i32_10 = arith.constant 0 : i32
    %21 = arith.cmpi ne, %20, %c0_i32_10 : i32
    scf.if %21 {
      %c0_14 = arith.constant 0 : index
      %c0_15 = arith.constant 0 : index
      %27 = vector.load %arg6[%c0_14, %c0_15] : memref<1x1xf32, #tpu.memory_space<vmem>>, vector<1x1xf32>
      %28 = math.sqrt %27 : vector<1x1xf32>
      %cst_16 = arith.constant 9.99999974E-5 : f32
      %29 = vector.broadcast %cst_16 : f32 to vector<1x1xf32>
      %30 = arith.addf %28, %29 : vector<1x1xf32>
      %cst_17 = arith.constant 1.000000e+00 : f32
      %31 = vector.broadcast %cst_17 : f32 to vector<1x1xf32>
      %32 = arith.divf %31, %30 : vector<1x1xf32>
      %33 = vector.broadcast %32 : vector<1x1xf32> to vector<40x1xf32>
      %34 = arith.mulf %5, %33 : vector<40x1xf32>
      %c0_18 = arith.constant 0 : index
      %c0_19 = arith.constant 0 : index
      %35 = vector.load %arg7[%c0_18, %c0_19] : memref<1x128xf32, #tpu.memory_space<vmem>>, vector<1x128xf32>
      %36 = vector.broadcast %34 : vector<40x1xf32> to vector<40x128xf32>
      %37 = arith.mulf %0, %36 : vector<40x128xf32>
      %cst_20 = arith.constant dense<0.000000e+00> : vector<128xf32>
      %38 = vector.multi_reduction <add>, %37, %cst_20 [0] : vector<40x128xf32> to vector<128xf32>
      %39 = vector.shape_cast %38 : vector<128xf32> to vector<1x128xf32>
      %40 = arith.addf %35, %39 : vector<1x128xf32>
      %c0_21 = arith.constant 0 : index
      %c0_22 = arith.constant 0 : index
      %41 = vector.load %arg7[%c0_21, %c0_22] : memref<1x128xf32, #tpu.memory_space<vmem>>, vector<1x128xf32>
      tpu.vector_store %arg7[%c0_21, %c0_22], %40 {strides = array<i32>} : memref<1x128xf32, #tpu.memory_space<vmem>>, vector<1x128xf32>,
    } else {
    }
    %c1_i32_11 = arith.constant 1 : i32
    %22 = arith.cmpi eq, %arg0, %c1_i32_11 : i32
    %c0_i32_12 = arith.constant 0 : i32
    %23 = arith.cmpi eq, %arg1, %c0_i32_12 : i32
    %24 = arith.andi %22, %23 : i1
    %25 = arith.extui %24 : i1 to i32
    %c0_i32_13 = arith.constant 0 : i32
    %26 = arith.cmpi ne, %25, %c0_i32_13 : i32
    scf.if %26 {
      %c0_14 = arith.constant 0 : index
      %c0_15 = arith.constant 0 : index
      %27 = vector.load %arg7[%c0_14, %c0_15] : memref<1x128xf32, #tpu.memory_space<vmem>>, vector<1x128xf32>
      %28 = arith.mulf %27, %27 : vector<1x128xf32>
      %29 = vector.shape_cast %28 : vector<1x128xf32> to vector<1x1x128xf32>
      %cst_16 = arith.constant dense<0.000000e+00> : vector<1xf32>
      %30 = vector.multi_reduction <add>, %29, %cst_16 [1, 2] : vector<1x1x128xf32> to vector<1xf32>
      %31 = vector.shape_cast %30 : vector<1xf32> to vector<1x1x1xf32>
      %32 = vector.extract %31[0, 0, 0] : f32 from vector<1x1x1xf32>
      %33 = vector.broadcast %32 : f32 to vector<1x1xf32>
      %34 = math.sqrt %33 : vector<1x1xf32>
      %cst_17 = arith.constant 9.99999974E-5 : f32
      %35 = vector.broadcast %cst_17 : f32 to vector<1x1xf32>
      %36 = arith.addf %34, %35 : vector<1x1xf32>
      %37 = vector.broadcast %36 : vector<1x1xf32> to vector<1x128xf32>
      %38 = arith.divf %27, %37 : vector<1x128xf32>
      %cst_18 = arith.constant 9.99999974E-5 : f32
      %39 = vector.broadcast %cst_18 : f32 to vector<1x1xf32>
      %40 = arith.addf %34, %39 : vector<1x1xf32>
      %41 = arith.divf %33, %40 : vector<1x1xf32>
      %c0_19 = arith.constant 0 : index
      %c0_20 = arith.constant 0 : index
      %42 = vector.load %arg5[%c0_19, %c0_20] : memref<1x128xf32, #tpu.memory_space<vmem>>, vector<1x128xf32>
      tpu.vector_store %arg5[%c0_19, %c0_20], %38 {strides = array<i32>} : memref<1x128xf32, #tpu.memory_space<vmem>>, vector<1x128xf32>,
      %cst_21 = arith.constant 1.000000e+00 : f32
      %43 = vector.broadcast %cst_21 : f32 to vector<1x1xf32>
      %44 = arith.divf %43, %41 : vector<1x1xf32>
      %c0_22 = arith.constant 0 : index
      %c0_23 = arith.constant 0 : index
      %45 = vector.load %arg4[%c0_22, %c0_23] : memref<1x1xf32, #tpu.memory_space<vmem>>, vector<1x1xf32>
      tpu.vector_store %arg4[%c0_22, %c0_23], %44 {strides = array<i32>} : memref<1x1xf32, #tpu.memory_space<vmem>>, vector<1x1xf32>,
    } else {
    }
    return
  }
  func.func @transform_0(%arg0: i32, %arg1: i32) -> (i32, i32) {
    %c0_i32 = arith.constant 0 : i32
    %c0_i32_0 = arith.constant 0 : i32
    return %arg1, %c0_i32 : i32, i32
  }
  func.func @transform_1(%arg0: i32, %arg1: i32) -> (i32, i32) {
    %c0_i32 = arith.constant 0 : i32
    %c0_i32_0 = arith.constant 0 : i32
    %c0_i32_1 = arith.constant 0 : i32
    return %c0_i32, %c0_i32_0 : i32, i32
  }
  func.func @transform_2(%arg0: i32, %arg1: i32) -> (i32, i32) {
    %c0_i32 = arith.constant 0 : i32
    %c0_i32_0 = arith.constant 0 : i32
    %c0_i32_1 = arith.constant 0 : i32
    return %c0_i32, %c0_i32_0 : i32, i32
  }
  func.func @transform_3(%arg0: i32, %arg1: i32) -> (i32, i32) {
    %c0_i32 = arith.constant 0 : i32
    %c0_i32_0 = arith.constant 0 : i32
    %c0_i32_1 = arith.constant 0 : i32
    return %c0_i32, %c0_i32_0 : i32, i32
  }
}

</mosaic_0001>

<llo_original>
// kernel: tpu_custom_call.1
$region0: #{tpu_custom_call.1}
  #allocation0 [shape = 'u32[]', space=smem, size = 0x4, offset = 0x4, fixed_abs, tag = 'smem constant byte address 0x4 - core index']
  #allocation1 [shape = 'u32[144,128]{1,0:T(1,128)}', space=vmem, size = 0x12000, scoped, tag = 'internal scratch']
  #allocation2 [shape = 'f32[1,1]{1,0:T(1,128)}', space=vmem, size = 0x200, scoped, tag = 'scratch operand']
  #allocation3 [shape = 'f32[1,128]{1,0:T(1,128)}', space=vmem, size = 0x200, scoped, tag = 'scratch operand']
  %s0 = inlined_call_operand.hbm [shape: f32[40,128], index: 0, kind: input, shape index: {}]
  %s1 = inlined_call_operand.vmem [shape: f32[1,128], index: 1, kind: input, shape index: {}]
  %s2 = inlined_call_operand.hbm [shape: f32[1,1], index: 2, kind: output, shape index: {0}]
  %s3 = inlined_call_operand.hbm [shape: f32[1,128], index: 3, kind: output, shape index: {1}]
  %4 = xla_tuple %s2, %s3
  %s5 = sld [smem:[#allocation0]]
  $region73: #{tpu_custom_call.1} parent=0
    _
  %s7 = ssub.s32 1, %s5
  %s8 = scalar_select 0, %s7, %s5
  $region1: #{tpu_custom_call.1} parent=0
    #allocation4 [shape = 'u8[20480]{0}', space=vmem, size = 0x5000, scoped, tag = 'input window, operand 0, single buffered']
    #allocation5 [shape = 's32[2]{0}', space=sflag, size = 0x8, scoped, tag = 'scoped memory for tpu_custom_call.1']
    #allocation6 [shape = 's32[2]{0}', space=sflag, size = 0x8, scoped, tag = 'scoped memory for tpu_custom_call.1']
    #allocation7 [shape = 'u8[512]{0}', space=vmem, size = 0x400, scoped, tag = 'output window, operand 0, single buffered']
    #allocation8 [shape = 'u8[512]{0}', space=vmem, size = 0x400, scoped, tag = 'output window, operand 1, single buffered']
    #allocation9 [shape = 's32[1]{0}', space=sflag, size = 0x4, scoped, tag = 'scoped memory for tpu_custom_call.1']
    %9 = vsyncpa [#allocation5], 0
    %10 = vsyncpa [#allocation6], 0
    %11 = vsyncpa [#allocation9], 0
    loop: start=0, step=1, limit=4
    $region2: #{tpu_custom_call.1} parent=1 // loop_pre_header
      _
    $region3: #{tpu_custom_call.1} parent=1 // loop_header
      %s13 = sphi 0, %s17
      %p14 = scmp.ge.s32.totalorder %s13, 4
      %s20 = sphi 0, %s32
      %s21 = sphi 0, %s28
      %s22 = sphi 0, %s20
      %s23 = sphi 0, %s21
      %s24 = sphi 0, %s22
      %s25 = sphi 0, %s23
      %s35 = sphi 0, %s37
      %s38 = sphi 0, %s35
      %s39 = sphi 0, %s38
      %s55 = sphi 0, %s39
      %s59 = sphi 0, %s59
      %s61 = sphi 0, %s59
      %s62 = sphi 0, %s61
      %s76 = sphi 0, %s62
      %s80 = sphi 0, %s80
      %s82 = sphi 0, %s80
      %s83 = sphi 0, %s82
      %s97 = sphi 0, %s83
      %s101 = sphi 0, %s101
      %s103 = sphi 0, %s101
      %s104 = sphi 0, %s103
      %s118 = sphi 0, %s104
    $region4: #{tpu_custom_call.1} parent=1 // loop_header_branch
      %16 = sbr.rel (%p14) target = $region8
    $region5: #{tpu_custom_call.1} parent=1 // loop_body
      %s18 = ssub.s32 %s13, 1
      %s19 = ssub.s32 %s13, 2
      %s26 = sadd.s32 1, %s21
      %p27 = scmp.ge.s32.totalorder %s26, 1
      %s28 = scalar_select %p27, 0, %s26
      %s29 = sadd.s32 1, %s20
      %s30 = scalar_select %p27, %s29, %s20
      %p31 = scmp.ge.s32.totalorder %s30, 2
      %s32 = scalar_select %p31, 0, %s30
      %s33 = ssub.s32 %s21, %s28
      %p34 = scmp.eq.s32.totalorder %s33, 0
      %s36 = sadd.s32 %s35, 1
      %s37 = scalar_select %p34, %s35, %s36
      %p40 = pneg %p34
      %p41 = scmp.eq.s32.totalorder %s13, 1
      %p42 = por %p40, %p41
      %p43 = scmp.ne.s32.totalorder %s35, %s38
      %p44 = scmp.eq.s32.totalorder %s13, 0
      %p45 = por %p43, %p44
      %p46 = scmp.ne.s32.totalorder %s35, %s38
      %p47 = scmp.eq.s32.totalorder %s18, 1
      %p48 = por %p46, %p47
      %p49 = scmp.ne.s32.totalorder %s38, %s39
      %p50 = scmp.eq.s32.totalorder %s18, 0
      %p51 = por %p49, %p50
      %p52 = scmp.ne.s32.totalorder %s38, %s39
      %p53 = scmp.eq.s32.totalorder %s19, 1
      %p54 = por %p52, %p53
      %p56 = scmp.ne.s32.totalorder %s39, %s55
      %p57 = scmp.eq.s32.totalorder %s19, 0
      %p58 = por %p56, %p57
      %s60 = sadd.s32 %s59, 1
      %p63 = scmp.eq.s32.totalorder %s13, 1
      %p64 = scmp.ne.s32.totalorder %s59, %s61
      %p65 = scmp.eq.s32.totalorder %s13, 0
      %p66 = por %p64, %p65
      %p67 = scmp.ne.s32.totalorder %s59, %s61
      %p68 = scmp.eq.s32.totalorder %s18, 1
      %p69 = por %p67, %p68
      %p70 = scmp.ne.s32.totalorder %s61, %s62
      %p71 = scmp.eq.s32.totalorder %s18, 0
      %p72 = por %p70, %p71
      %p73 = scmp.ne.s32.totalorder %s61, %s62
      %p74 = scmp.eq.s32.totalorder %s19, 1
      %p75 = por %p73, %p74
      %p77 = scmp.ne.s32.totalorder %s62, %s76
      %p78 = scmp.eq.s32.totalorder %s19, 0
      %p79 = por %p77, %p78
      %s81 = sadd.s32 %s80, 1
      %p84 = scmp.eq.s32.totalorder %s13, 1
      %p85 = scmp.ne.s32.totalorder %s80, %s82
      %p86 = scmp.eq.s32.totalorder %s13, 0
      %p87 = por %p85, %p86
      %p88 = scmp.ne.s32.totalorder %s80, %s82
      %p89 = scmp.eq.s32.totalorder %s18, 1
      %p90 = por %p88, %p89
      %p91 = scmp.ne.s32.totalorder %s82, %s83
      %p92 = scmp.eq.s32.totalorder %s18, 0
      %p93 = por %p91, %p92
      %p94 = scmp.ne.s32.totalorder %s82, %s83
      %p95 = scmp.eq.s32.totalorder %s19, 1
      %p96 = por %p94, %p95
      %p98 = scmp.ne.s32.totalorder %s83, %s97
      %p99 = scmp.eq.s32.totalorder %s19, 0
      %p100 = por %p98, %p99
      %s102 = sadd.s32 %s101, 1
      %p105 = scmp.eq.s32.totalorder %s13, 1
      %p106 = scmp.ne.s32.totalorder %s101, %s103
      %p107 = scmp.eq.s32.totalorder %s13, 0
      %p108 = por %p106, %p107
      %p109 = scmp.ne.s32.totalorder %s101, %s103
      %p110 = scmp.eq.s32.totalorder %s18, 1
      %p111 = por %p109, %p110
      %p112 = scmp.ne.s32.totalorder %s103, %s104
      %p113 = scmp.eq.s32.totalorder %s18, 0
      %p114 = por %p112, %p113
      %p115 = scmp.ne.s32.totalorder %s103, %s104
      %p116 = scmp.eq.s32.totalorder %s19, 1
      %p117 = por %p115, %p116
      %p119 = scmp.ne.s32.totalorder %s104, %s118
      %p120 = scmp.eq.s32.totalorder %s19, 0
      %p121 = por %p119, %p120
      %p122 = scmp.le.s32.totalorder 1, %s13
      %p123 = scmp.lt.s32.totalorder %s13, 3
      %p124 = pnand %p122, %p123
      %p125 = pneg %p124
      // Predicated region
      $region9: #{tpu_custom_call.1} parent=5 // pred_check
        _
      $region10: #{tpu_custom_call.1} parent=5 // pred_check_branch
        %127 = sbr.rel (%p124) target = $region12
      $region11: #{tpu_custom_call.1} parent=5 // pred_region
        %s128 = ssub.s32 %s13, 1
        // Predicated region
        $region13: #{tpu_custom_call.1} parent=11 // pred_check
          %p129 = pneg %p51
        $region14: #{tpu_custom_call.1} parent=11 // pred_check_branch
          %131 = sbr.rel (%p129) target = $region16
        $region15: #{tpu_custom_call.1} parent=11 // pred_region
          %s132 = smul.u32 5, %s23
          %s134 = ssub.s32 640, 640
          %135 = vsyncadd [#allocation5], %s134
          %s136 = smul.addr %s132, 128
          %s137 = scalar_lea.hbm %s0, %s136
          %s138 = sshll.u32 [#allocation4], 4
          %s139 = int_to_ptr.vmem [resolvable:$true] %s138
          %144 = dma.hbm_to_vmem [thread:$0]  %s137, 640, %s139, [#allocation5], 128, 128, 8
        $region16: #{tpu_custom_call.1} parent=11 // pred_fallthru
          _
        // Predicated region
        $region17: #{tpu_custom_call.1} parent=11 // pred_check
          %p145 = pneg %p72
        $region18: #{tpu_custom_call.1} parent=11 // pred_check_branch
          %147 = sbr.rel (%p145) target = $region20
        $region19: #{tpu_custom_call.1} parent=11 // pred_region
          _
        $region20: #{tpu_custom_call.1} parent=11 // pred_fallthru
          _
      $region12: #{tpu_custom_call.1} parent=5 // pred_fallthru
        _
      %p148 = scmp.lt.s32.totalorder %s13, 2
      // Predicated region
      $region21: #{tpu_custom_call.1} parent=5 // pred_check
        %p149 = pneg %p148
      $region22: #{tpu_custom_call.1} parent=5 // pred_check_branch
        %151 = sbr.rel (%p149) target = $region24
      $region23: #{tpu_custom_call.1} parent=5 // pred_region
        _
      $region24: #{tpu_custom_call.1} parent=5 // pred_fallthru
        _
      %p152 = scmp.le.s32.totalorder 1, %s13
      %p153 = scmp.lt.s32.totalorder %s13, 3
      %p154 = pnand %p152, %p153
      %p155 = pneg %p154
      // Predicated region
      $region25: #{tpu_custom_call.1} parent=5 // pred_check
        _
      $region26: #{tpu_custom_call.1} parent=5 // pred_check_branch
        %157 = sbr.rel (%p154) target = $region28
      $region27: #{tpu_custom_call.1} parent=5 // pred_region
        %s158 = ssub.s32 %s13, 1
        // Predicated region
        $region29: #{tpu_custom_call.1} parent=27 // pred_check
          %p159 = pneg %p51
        $region30: #{tpu_custom_call.1} parent=27 // pred_check_branch
          %161 = sbr.rel (%p159) target = $region32
        $region31: #{tpu_custom_call.1} parent=27 // pred_region
          %162 = dma.done [#allocation5], 640
        $region32: #{tpu_custom_call.1} parent=27 // pred_fallthru
          _
        %p163 = pneg %p51
        %p164 = pneg %p48
        %p165 = pneg %p72
        %p166 = pneg %p69
        %p167 = pneg %p93
        %p168 = pneg %p90
        %p169 = pneg %p114
        %p170 = pneg %p111
        %s171 = smul.u32 5, %s23
        %v172 = vld [vmem:[#allocation4] sm:$0xff]
        %v173 = vld [vmem:[#allocation4 + $0x8] sm:$0xff]
        %v174 = vld [vmem:[#allocation4 + $0x10] sm:$0xff]
        %v175 = vld [vmem:[#allocation4 + $0x18] sm:$0xff]
        %v176 = vld [vmem:[#allocation4 + $0x20] sm:$0xff]
        %v177 = vld [vmem:[%s1] sm:$0x1]
        %v179 = vlaneseq
        %v180 = vshrl.u32 %v179, 7
        %v181 = vsub.s32 0, %v180
        %v182 = vrot.slane %v177, %v181
        %v184 = vmul.f32 %v172, %v182
        %v185 = vmul.f32 %v173, %v182
        %v186 = vmul.f32 %v174, %v182
        %v187 = vmul.f32 %v175, %v182
        %v188 = vmul.f32 %v176, %v182
        %189 = vadd.xlane.f32.xlu0 %v184
        %v190 = vpop.xlane.xlu0 %189
        %191 = vadd.xlane.f32.xlu0 %v185
        %v192 = vpop.xlane.xlu0 %191
        %193 = vadd.xlane.f32.xlu0 %v186
        %v194 = vpop.xlane.xlu0 %193
        %195 = vadd.xlane.f32.xlu0 %v187
        %v196 = vpop.xlane.xlu0 %195
        %197 = vadd.xlane.f32.xlu0 %v188
        %v198 = vpop.xlane.xlu0 %197
        %p199 = scmp.eq.s32.totalorder %s22, 0
        %p200 = scmp.eq.s32.totalorder %s23, 0
        %p201 = pnand %p199, %p200
        %p202 = pneg %p201
        // Predicated region
        $region33: #{tpu_custom_call.1} parent=27 // pred_check
          _
        $region34: #{tpu_custom_call.1} parent=27 // pred_check_branch
          %204 = sbr.rel (%p201) target = $region36
        $region35: #{tpu_custom_call.1} parent=27 // pred_region
          %vm205 = vcmask 0
          %206 = vst.msk [vmem:[#allocation2] sm:$0x1] %vm205, 0.0
        $region36: #{tpu_custom_call.1} parent=27 // pred_fallthru
          _
        // Predicated region
        $region37: #{tpu_custom_call.1} parent=27 // pred_check
          %p207 = pneg %p199
        $region38: #{tpu_custom_call.1} parent=27 // pred_check_branch
          %209 = sbr.rel (%p207) target = $region40
        $region39: #{tpu_custom_call.1} parent=27 // pred_region
          %v210 = vld [vmem:[#allocation2] sm:$0x1]
          %v211 = vmul.f32 %v190, %v190
          %v212 = vmul.f32 %v192, %v192
          %v213 = vmul.f32 %v194, %v194
          %v214 = vmul.f32 %v196, %v196
          %v215 = vmul.f32 %v198, %v198
          %vm216 = vcmask 7168
          %v217 = vsel %vm216, %v211, 0.0
          %v218 = vsel %vm216, %v212, 0.0
          %v219 = vadd.f32 %v217, %v218
          %v220 = vsel %vm216, %v213, 0.0
          %v221 = vadd.f32 %v219, %v220
          %v222 = vsel %vm216, %v214, 0.0
          %v223 = vadd.f32 %v221, %v222
          %v224 = vsel %vm216, %v215, 0.0
          %v225 = vadd.f32 %v223, %v224
          %226 = vadd.xlane.f32.xlu0 %v225
          %v227 = vpop.xlane.xlu0 %226
          %v228 = vrot.slane %v227, 4
          %v229 = vadd.f32 %v227, %v228
          %v230 = vrot.slane %v229, 2
          %v231 = vadd.f32 %v229, %v230
          %v232 = vrot.slane %v231, 1
          %v233 = vadd.f32 %v231, %v232
          %s234 = vtos %v233
          %v235 = vstv %s234
          %v236 = vadd.f32 %v210, %v235
          %vm237 = vcmask 0
          %238 = vst.msk [vmem:[#allocation2] sm:$0x1] %vm237, %v236
        $region40: #{tpu_custom_call.1} parent=27 // pred_fallthru
          _
        %p239 = scmp.eq.s32.totalorder %s22, 1
        %p240 = pnand %p239, %p200
        %p241 = pneg %p240
        // Predicated region
        $region41: #{tpu_custom_call.1} parent=27 // pred_check
          _
        $region42: #{tpu_custom_call.1} parent=27 // pred_check_branch
          %243 = sbr.rel (%p240) target = $region44
        $region43: #{tpu_custom_call.1} parent=27 // pred_region
          %244 = vst [vmem:[#allocation3] sm:$0x1] 0.0
        $region44: #{tpu_custom_call.1} parent=27 // pred_fallthru
          _
        // Predicated region
        $region45: #{tpu_custom_call.1} parent=27 // pred_check
          %p245 = pneg %p239
        $region46: #{tpu_custom_call.1} parent=27 // pred_check_branch
          %247 = sbr.rel (%p245) target = $region48
        $region47: #{tpu_custom_call.1} parent=27 // pred_region
          %v248 = vld [vmem:[#allocation2] sm:$0x1]
          %v249 = vrsqrt.pop %v248
          %v250 = vmul.f32 %v248, %v249
          %vm251 = vcmp.eq.f32.partialorder %v248, inf
          %v252 = vsel %vm251, %v248, %v250
          %vm253 = vcmp.eq.f32.partialorder %v248, 0.0
          %v254 = vand.u32 %v248, 2147483648
          %v255 = vsel %vm253, %v254, %v252
          %v256 = vadd.f32 %v255, 0.0001
          %v257 = vrcp.pop %v256
          %v258 = vmul.f32 1.0, %v257
          %v260 = vlaneseq
          %v261 = vshrl.u32 %v260, 7
          %v262 = vsub.s32 0, %v261
          %v263 = vrot.slane %v258, %v262
          %v265 = vmul.f32 %v190, %v263
          %v266 = vmul.f32 %v192, %v263
          %v267 = vmul.f32 %v194, %v263
          %v268 = vmul.f32 %v196, %v263
          %v269 = vmul.f32 %v198, %v263
          %v270 = vld [vmem:[#allocation3] sm:$0x1]
          %272 = vset.pattern.permute.xlu0 0
          %273 = vperm.xlu0 %272, %v265
          %v274 = vpop.permute.xlu0 %273
          %277 = vset.pattern.permute.xlu0 0
          %278 = vperm.xlu0 %277, %v266
          %v279 = vpop.permute.xlu0 %278
          %282 = vset.pattern.permute.xlu0 0
          %283 = vperm.xlu0 %282, %v267
          %v284 = vpop.permute.xlu0 %283
          %287 = vset.pattern.permute.xlu0 0
          %288 = vperm.xlu0 %287, %v268
          %v289 = vpop.permute.xlu0 %288
          %292 = vset.pattern.permute.xlu0 0
          %293 = vperm.xlu0 %292, %v269
          %v294 = vpop.permute.xlu0 %293
          %v296 = vmul.f32 %v172, %v274
          %v297 = vmul.f32 %v173, %v279
          %v298 = vmul.f32 %v174, %v284
          %v299 = vmul.f32 %v175, %v289
          %v300 = vmul.f32 %v176, %v294
          %v301 = vadd.f32 %v296, %v297
          %v302 = vadd.f32 %v301, %v298
          %v303 = vadd.f32 %v302, %v299
          %v304 = vadd.f32 %v303, %v300
          %v305 = vrot.slane %v304, 4
          %v306 = vadd.f32 %v304, %v305
          %v307 = vrot.slane %v306, 2
          %v308 = vadd.f32 %v306, %v307
          %v309 = vrot.slane %v308, 1
          %v310 = vadd.f32 %v308, %v309
          %v311 = vadd.f32 %v270, %v310
          %312 = vst [vmem:[#allocation3] sm:$0x1] %v311
        $region48: #{tpu_custom_call.1} parent=27 // pred_fallthru
          _
        // Predicated region
        $region49: #{tpu_custom_call.1} parent=27 // pred_check
          _
        $region50: #{tpu_custom_call.1} parent=27 // pred_check_branch
          %314 = sbr.rel (%p240) target = $region52
        $region51: #{tpu_custom_call.1} parent=27 // pred_region
          %v315 = vld [vmem:[#allocation3] sm:$0x1]
          %v316 = vmul.f32 %v315, %v315
          %vm317 = vcmask 1040384
          %v318 = vsel %vm317, %v316, 0.0
          %319 = vadd.xlane.f32.xlu0 %v318
          %v320 = vpop.xlane.xlu0 %319
          %v321 = vrot.slane %v320, 4
          %v322 = vadd.f32 %v320, %v321
          %v323 = vrot.slane %v322, 2
          %v324 = vadd.f32 %v322, %v323
          %v325 = vrot.slane %v324, 1
          %v326 = vadd.f32 %v324, %v325
          %s327 = vtos %v326
          %v328 = vstv %s327
          %v329 = vrsqrt.pop %v328
          %v330 = vmul.f32 %v328, %v329
          %vm331 = vcmp.eq.f32.partialorder %v328, inf
          %v332 = vsel %vm331, %v328, %v330
          %vm333 = vcmp.eq.f32.partialorder %v328, 0.0
          %v334 = vand.u32 %v328, 2147483648
          %v335 = vsel %vm333, %v334, %v332
          %v336 = vadd.f32 %v335, 0.0001
          %v337 = vrcp.pop %v336
          %v338 = vmul.f32 %v315, %v337
          %v339 = vmul.f32 %v328, %v337
          %340 = vst [vmem:[#allocation8] sm:$0x1] %v338
          %v341 = vrcp.pop %v339
          %v342 = vmul.f32 1.0, %v341
          %vm343 = vcmask 0
          %344 = vst.msk [vmem:[#allocation7] sm:$0x1] %vm343, %v342
        $region52: #{tpu_custom_call.1} parent=27 // pred_fallthru
          _
        // Predicated region
        $region53: #{tpu_custom_call.1} parent=27 // pred_check
          %p345 = pneg %p90
        $region54: #{tpu_custom_call.1} parent=27 // pred_check_branch
          %347 = sbr.rel (%p345) target = $region56
        $region55: #{tpu_custom_call.1} parent=27 // pred_region
          %s349 = ssub.s32 16, 16
          %350 = vsyncadd [#allocation6], %s349
          %s352 = sshll.u32 [#allocation7], 4
          %s353 = int_to_ptr.vmem [resolvable:$true] %s352
          %355 = dma.vmem_to_hbm [thread:$0]  %s353, 16, %s2, [#allocation6]
        $region56: #{tpu_custom_call.1} parent=27 // pred_fallthru
          _
        // Predicated region
        $region57: #{tpu_custom_call.1} parent=27 // pred_check
          %p356 = pneg %p111
        $region58: #{tpu_custom_call.1} parent=27 // pred_check_branch
          %358 = sbr.rel (%p356) target = $region60
        $region59: #{tpu_custom_call.1} parent=27 // pred_region
          %s360 = ssub.s32 16, 16
          %361 = vsyncadd [#allocation9], %s360
          %s363 = sshll.u32 [#allocation8], 4
          %s364 = int_to_ptr.vmem [resolvable:$true] %s363
          %366 = dma.vmem_to_hbm [thread:$0]  %s364, 16, %s3, [#allocation9]
        $region60: #{tpu_custom_call.1} parent=27 // pred_fallthru
          _
        // Predicated region
        $region61: #{tpu_custom_call.1} parent=27 // pred_check
          %p367 = pneg %p90
        $region62: #{tpu_custom_call.1} parent=27 // pred_check_branch
          %369 = sbr.rel (%p367) target = $region64
        $region63: #{tpu_custom_call.1} parent=27 // pred_region
          %370 = dma.done [#allocation6], 16
        $region64: #{tpu_custom_call.1} parent=27 // pred_fallthru
          _
        // Predicated region
        $region65: #{tpu_custom_call.1} parent=27 // pred_check
          %p371 = pneg %p111
        $region66: #{tpu_custom_call.1} parent=27 // pred_check_branch
          %373 = sbr.rel (%p371) target = $region68
        $region67: #{tpu_custom_call.1} parent=27 // pred_region
          %374 = dma.done [#allocation9], 16
        $region68: #{tpu_custom_call.1} parent=27 // pred_fallthru
          _
      $region28: #{tpu_custom_call.1} parent=5 // pred_fallthru
        _
      %p375 = scmp.le.s32.totalorder 2, %s13
      // Predicated region
      $region69: #{tpu_custom_call.1} parent=5 // pred_check
        %p376 = pneg %p375
      $region70: #{tpu_custom_call.1} parent=5 // pred_check_branch
        %378 = sbr.rel (%p376) target = $region72
      $region71: #{tpu_custom_call.1} parent=5 // pred_region
        %s379 = ssub.s32 %s13, 2
      $region72: #{tpu_custom_call.1} parent=5 // pred_fallthru
        _
    $region6: #{tpu_custom_call.1} parent=1 // loop_footer
      %s17 = sadd.s32 1, %s13
    $region7: #{tpu_custom_call.1} parent=1 // loop_footer_branch
      %12 = sbr.rel target = $region3
    $region8: #{tpu_custom_call.1} parent=1 // loop_exit
      _
    %380 = vsyncpa [#allocation5], 1
    %s381 = scalar_lea.sflag [#allocation5], 1
    %382 = vsyncpa %s381, 1
    %383 = vsyncpa [#allocation6], 1
    %s384 = scalar_lea.sflag [#allocation6], 1
    %385 = vsyncpa %s384, 1
    %386 = vsyncpa [#allocation9], 1

</llo_original>
